<compile_context>
chip_gen: v5e
topology: v5e:2x2
jax: 0.10.0
libtpu: 0.0.40
codegen_flags: <defaults>
</compile_context>

<pallas_src>
import jax
import jax.numpy as jnp
from jax import lax
from jax.experimental import pallas as pl
from jax.experimental.pallas import tpu as pltpu

EPS = 1e-5


# ---------------------------------------------------------------- Pallas kernel

def residual_block_kernel(x_ref, r_ref, a1_ref, t1_ref, a2_ref, p_ref, t2_ref,
                          o_ref):
    """Fully fused ResidualBlock forward.

    Layout: rows = (n, i), columns = (j, c)  (c fastest, lane-dense).
      x_ref : (N*H, W*C_in)        input activations
      r_ref : (3, N*H, N*H)        row-selection mats (i-shift + reflect), per ki
      a1_ref: (3, W*C_in,  W*C_out) banded conv1 weights (BN1 scale folded)
      t1_ref: (1, W*C_out)          conv1 bias * scale + BN1 shift (tiled over j)
      a2_ref: (3, W*C_out, W*C_out) banded conv2 weights (BN2 scale folded)
      p_ref : (W*C_in,  W*C_out)    block-diag 1x1 projection weights
      t2_ref: (1, W*C_out)          conv2/BN2 shift + projection bias (tiled)
      o_ref : (N*H, W*C_out)        output
    """
    x = x_ref[...]                                            # (N*H, W*C_in)

    # ---- stage 1: conv3x3(reflect) + BatchNorm + ReLU (all folded into matmuls)
    acc = jnp.zeros(o_ref.shape, jnp.float32)
    for ki in range(3):
        xs = jnp.dot(r_ref[ki], x, preferred_element_type=jnp.float32)
        acc = acc + jnp.dot(xs, a1_ref[ki], preferred_element_type=jnp.float32)
    h = jnp.maximum(acc + t1_ref[...], 0.0)                   # (N*H, W*C_out)

    # ---- stage 2: conv3x3(reflect) + BatchNorm, + 1x1 projection, add, ReLU
    acc = jnp.dot(x, p_ref[...], preferred_element_type=jnp.float32)
    for ki in range(3):
        hs = jnp.dot(r_ref[ki], h, preferred_element_type=jnp.float32)
        acc = acc + jnp.dot(hs, a2_ref[ki], preferred_element_type=jnp.float32)
    o_ref[...] = jnp.maximum(acc + t2_ref[...], 0.0)


# ---------------------------------------------------------------- trace-time helpers

def _reflect_index(idx, n):
    idx = jnp.where(idx < 0, -idx, idx)
    idx = jnp.where(idx >= n, 2 * (n - 1) - idx, idx)
    return idx


def _fold_bn(bn_params):
    gamma, beta, rmean, rvar = bn_params
    scale = gamma / jnp.sqrt(rvar + EPS)
    shift = beta - rmean * scale
    return scale, shift


def _row_select_mats(N, H):
    """(3, N*H, N*H): R[ki] maps output row (n, i) -> source row (n, reflect(i+ki-1))."""
    i = jnp.arange(H)
    mats = []
    for di in (-1, 0, 1):
        src = _reflect_index(i + di, H)
        E = (src[:, None] == jnp.arange(H)[None, :]).astype(jnp.float32)   # (H, H)
        mats.append(jnp.kron(jnp.eye(N, dtype=jnp.float32), E))
    return jnp.stack(mats, axis=0)


def _banded_conv_mats(w_oihw, scale, W):
    """3x3 conv (reflect pad in j) + BN scale as 3 banded matrices.

    A[ki][(j_src, ci), (j, co)] = sum_{dj: reflect(j+dj)==j_src} w[co,ci,ki,dj] * scale[co]
    """
    C_out, C_in = w_oihw.shape[0], w_oihw.shape[1]
    j = jnp.arange(W)
    dj = jnp.arange(3) - 1
    src = _reflect_index(j[None, :] + dj[:, None], W)                       # (3, W)
    S = (src[:, :, None] == jnp.arange(W)[None, None, :]).astype(jnp.float32)  # (dj, j, j_src)
    ws = jnp.transpose(w_oihw, (2, 3, 1, 0)) * scale[None, None, None, :]   # (ki, dj, ci, co)
    A = jnp.einsum('djs,kdio->ksijo', S, ws)                                # (ki, j_src, ci, j, co)
    return A.reshape(3, W * C_in, W * C_out)


# ---------------------------------------------------------------- wrapper

def residual_block_forward(x, params):
    """Pallas implementation of ResidualBlock.forward. x: (N, C_in, H, W) NCHW."""
    N, C_in, H, W = x.shape
    C_out = params["w2"].shape[0]
    NH, WCi, WCo = N * H, W * C_in, W * C_out

    s1, sh1 = _fold_bn(params["bn1"])
    s2, sh2 = _fold_bn(params["bn2"])

    # Activations in rows=(n,i), cols=(j,c) layout (lane-dense output: W*C_out = 128).
    x2d = x.transpose(0, 2, 3, 1).reshape(NH, WCi)

    r = _row_select_mats(N, H)                                  # (3, NH, NH)
    a1 = _banded_conv_mats(params["w1"], s1, W)                 # (3, W*C_in,  W*C_out)
    a2 = _banded_conv_mats(params["w2"], s2, W)                 # (3, W*C_out, W*C_out)
    wp_mat = params["wp"].reshape(C_out, C_in).T                # (C_in, C_out)
    p = jnp.kron(jnp.eye(W, dtype=jnp.float32), wp_mat)         # (W*C_in, W*C_out)
    t1 = jnp.tile(params["b1"] * s1 + sh1, W)[None, :]          # (1, W*C_out)
    t2 = jnp.tile(params["b2"] * s2 + sh2 + params["bp"], W)[None, :]

    vmem = lambda: pl.BlockSpec(memory_space=pltpu.MemorySpace.VMEM)
    y2d = pl.pallas_call(
        residual_block_kernel,
        out_shape=jax.ShapeDtypeStruct((NH, WCo), jnp.float32),
        in_specs=[vmem() for _ in range(7)],
        out_specs=vmem(),
    )(x2d, r, a1, t1, a2, p, t2)

    return y2d.reshape(N, H, W, C_out).transpose(0, 3, 1, 2)    # back to NCHW


# ---------------------------------------------------------------- pure-JAX reference

def residual_block_reference(x, params):
    def conv(x, w, b, k):
        p = k // 2
        xp = (jnp.pad(x, ((0, 0), (0, 0), (p, p), (p, p)), mode="reflect")
              if p > 0 else x)
        y = lax.conv_general_dilated(
            xp, w, window_strides=(1, 1), padding="VALID",
            dimension_numbers=("NCHW", "OIHW", "NCHW"))
        return y + b[None, :, None, None]

    def bn(x, bn_params):
        s, t = _fold_bn(bn_params)
        return x * s[None, :, None, None] + t[None, :, None, None]

    h = jax.nn.relu(bn(conv(x, params["w1"], params["b1"], 3), params["bn1"]))
    y = bn(conv(h, params["w2"], params["b2"], 3), params["bn2"])
    proj = conv(x, params["wp"], params["bp"], 1)
    return jax.nn.relu(y + proj)


# ---------------------------------------------------------------- setup / run

def make_params(key, c_in, c_out):
    ks = jax.random.split(key, 12)

    def bn_p(k1, k2, k3, k4, c):
        return (jax.random.uniform(k1, (c,), jnp.float32, 0.5, 1.5),   # gamma
                0.1 * jax.random.normal(k2, (c,), jnp.float32),        # beta
                0.1 * jax.random.normal(k3, (c,), jnp.float32),        # running_mean
                jax.random.uniform(k4, (c,), jnp.float32, 0.5, 1.5))   # running_var

    return {
        "w1": 0.1 * jax.random.normal(ks[0], (c_out, c_in, 3, 3), jnp.float32),
        "b1": 0.1 * jax.random.normal(ks[1], (c_out,), jnp.float32),
        "bn1": bn_p(ks[2], ks[3], ks[4], ks[5], c_out),
        "w2": 0.1 * jax.random.normal(ks[6], (c_out, c_out, 3, 3), jnp.float32),
        "b2": 0.1 * jax.random.normal(ks[7], (c_out,), jnp.float32),
        "bn2": bn_p(ks[8], ks[9], ks[10], ks[11], c_out),
        "wp": 0.1 * jax.random.normal(jax.random.fold_in(key, 100),
                                      (c_out, c_in, 1, 1), jnp.float32),
        "bp": 0.1 * jax.random.normal(jax.random.fold_in(key, 101),
                                      (c_out,), jnp.float32),
    }


if __name__ == "__main__":
    key = jax.random.PRNGKey(0)
    kx, kp = jax.random.split(key)

    N, C_IN, C_OUT, H, W = 2, 4, 8, 16, 16
    x = jax.random.normal(kx, (N, C_IN, H, W), jnp.float32)
    params = make_params(kp, C_IN, C_OUT)

    out = jax.jit(residual_block_forward)(x, params)
    out = jax.block_until_ready(out)

    ref = residual_block_reference(x, params)
    assert out.shape == (N, C_OUT, H, W)
    assert jnp.allclose(out, ref, rtol=1e-4, atol=1e-4), "mismatch vs reference"

    print("KERNEL_OK")
</pallas_src>

<mosaic_0001>
module attributes {stable_mosaic.version = 11 : i64} {
  func.func @residual_block_kernel(%arg0: memref<32x64xf32, #tpu.memory_space<vmem>>, %arg1: memref<3x32x32xf32, #tpu.memory_space<vmem>>, %arg2: memref<3x64x128xf32, #tpu.memory_space<vmem>>, %arg3: memref<1x128xf32, #tpu.memory_space<vmem>>, %arg4: memref<3x128x128xf32, #tpu.memory_space<vmem>>, %arg5: memref<64x128xf32, #tpu.memory_space<vmem>>, %arg6: memref<1x128xf32, #tpu.memory_space<vmem>>, %arg7: memref<32x128xf32, #tpu.memory_space<vmem>>) attributes {dimension_semantics = [], scalar_prefetch = 0 : i64, scratch_operands = 0 : i64, tpu.core_type = #tpu.core_type<tc>} {
    %c0 = arith.constant 0 : index
    %c0_0 = arith.constant 0 : index
    %0 = vector.load %arg0[%c0, %c0_0] : memref<32x64xf32, #tpu.memory_space<vmem>>, vector<32x64xf32>
    %cst = arith.constant 0.000000e+00 : f32
    %1 = vector.broadcast %cst : f32 to vector<32x128xf32>
    %c0_1 = arith.constant 0 : index
    %c0_2 = arith.constant 0 : index
    %c0_3 = arith.constant 0 : index
    %2 = vector.load %arg1[%c0_1, %c0_2, %c0_3] : memref<3x32x32xf32, #tpu.memory_space<vmem>>, vector<1x32x32xf32>
    %3 = vector.shape_cast %2 : vector<1x32x32xf32> to vector<32x32xf32>
    %cst_4 = arith.constant dense<0.000000e+00> : vector<32x64xf32>
    %4 = tpu.matmul %3, %0, %cst_4 {dimension_numbers = #tpu.dot_dimension_numbers<[1], [0], [0], [1], [0, 0, 1, 1], [], []>} : vector<32x32xf32>, vector<32x64xf32>, vector<32x64xf32> -> vector<32x64xf32>
    %c0_5 = arith.constant 0 : index
    %c0_6 = arith.constant 0 : index
    %c0_7 = arith.constant 0 : index
    %5 = vector.load %arg2[%c0_5, %c0_6, %c0_7] : memref<3x64x128xf32, #tpu.memory_space<vmem>>, vector<1x64x128xf32>
    %6 = vector.shape_cast %5 : vector<1x64x128xf32> to vector<64x128xf32>
    %cst_8 = arith.constant dense<0.000000e+00> : vector<32x128xf32>
    %7 = tpu.matmul %4, %6, %cst_8 {dimension_numbers = #tpu.dot_dimension_numbers<[1], [0], [0], [1], [0, 0, 1, 1], [], []>} : vector<32x64xf32>, vector<64x128xf32>, vector<32x128xf32> -> vector<32x128xf32>
    %8 = arith.addf %1, %7 : vector<32x128xf32>
    %c1 = arith.constant 1 : index
    %c0_9 = arith.constant 0 : index
    %c0_10 = arith.constant 0 : index
    %9 = vector.load %arg1[%c1, %c0_9, %c0_10] : memref<3x32x32xf32, #tpu.memory_space<vmem>>, vector<1x32x32xf32>
    %10 = vector.shape_cast %9 : vector<1x32x32xf32> to vector<32x32xf32>
    %cst_11 = arith.constant dense<0.000000e+00> : vector<32x64xf32>
    %11 = tpu.matmul %10, %0, %cst_11 {dimension_numbers = #tpu.dot_dimension_numbers<[1], [0], [0], [1], [0, 0, 1, 1], [], []>} : vector<32x32xf32>, vector<32x64xf32>, vector<32x64xf32> -> vector<32x64xf32>
    %c1_12 = arith.constant 1 : index
    %c0_13 = arith.constant 0 : index
    %c0_14 = arith.constant 0 : index
    %12 = vector.load %arg2[%c1_12, %c0_13, %c0_14] : memref<3x64x128xf32, #tpu.memory_space<vmem>>, vector<1x64x128xf32>
    %13 = vector.shape_cast %12 : vector<1x64x128xf32> to vector<64x128xf32>
    %cst_15 = arith.constant dense<0.000000e+00> : vector<32x128xf32>
    %14 = tpu.matmul %11, %13, %cst_15 {dimension_numbers = #tpu.dot_dimension_numbers<[1], [0], [0], [1], [0, 0, 1, 1], [], []>} : vector<32x64xf32>, vector<64x128xf32>, vector<32x128xf32> -> vector<32x128xf32>
    %15 = arith.addf %8, %14 : vector<32x128xf32>
    %c2 = arith.constant 2 : index
    %c0_16 = arith.constant 0 : index
    %c0_17 = arith.constant 0 : index
    %16 = vector.load %arg1[%c2, %c0_16, %c0_17] : memref<3x32x32xf32, #tpu.memory_space<vmem>>, vector<1x32x32xf32>
    %17 = vector.shape_cast %16 : vector<1x32x32xf32> to vector<32x32xf32>
    %cst_18 = arith.constant dense<0.000000e+00> : vector<32x64xf32>
    %18 = tpu.matmul %17, %0, %cst_18 {dimension_numbers = #tpu.dot_dimension_numbers<[1], [0], [0], [1], [0, 0, 1, 1], [], []>} : vector<32x32xf32>, vector<32x64xf32>, vector<32x64xf32> -> vector<32x64xf32>
    %c2_19 = arith.constant 2 : index
    %c0_20 = arith.constant 0 : index
    %c0_21 = arith.constant 0 : index
    %19 = vector.load %arg2[%c2_19, %c0_20, %c0_21] : memref<3x64x128xf32, #tpu.memory_space<vmem>>, vector<1x64x128xf32>
    %20 = vector.shape_cast %19 : vector<1x64x128xf32> to vector<64x128xf32>
    %cst_22 = arith.constant dense<0.000000e+00> : vector<32x128xf32>
    %21 = tpu.matmul %18, %20, %cst_22 {dimension_numbers = #tpu.dot_dimension_numbers<[1], [0], [0], [1], [0, 0, 1, 1], [], []>} : vector<32x64xf32>, vector<64x128xf32>, vector<32x128xf32> -> vector<32x128xf32>
    %22 = arith.addf %15, %21 : vector<32x128xf32>
    %c0_23 = arith.constant 0 : index
    %c0_24 = arith.constant 0 : index
    %23 = vector.load %arg3[%c0_23, %c0_24] : memref<1x128xf32, #tpu.memory_space<vmem>>, vector<1x128xf32>
    %24 = vector.broadcast %23 : vector<1x128xf32> to vector<32x128xf32>
    %25 = arith.addf %22, %24 : vector<32x128xf32>
    %cst_25 = arith.constant 0.000000e+00 : f32
    %26 = vector.broadcast %cst_25 : f32 to vector<32x128xf32>
    %27 = arith.maximumf %25, %26 : vector<32x128xf32>
    %c0_26 = arith.constant 0 : index
    %c0_27 = arith.constant 0 : index
    %28 = vector.load %arg5[%c0_26, %c0_27] : memref<64x128xf32, #tpu.memory_space<vmem>>, vector<64x128xf32>
    %cst_28 = arith.constant dense<0.000000e+00> : vector<32x128xf32>
    %29 = tpu.matmul %0, %28, %cst_28 {dimension_numbers = #tpu.dot_dimension_numbers<[1], [0], [0], [1], [0, 0, 1, 1], [], []>} : vector<32x64xf32>, vector<64x128xf32>, vector<32x128xf32> -> vector<32x128xf32>
    %c0_29 = arith.constant 0 : index
    %c0_30 = arith.constant 0 : index
    %c0_31 = arith.constant 0 : index
    %30 = vector.load %arg1[%c0_29, %c0_30, %c0_31] : memref<3x32x32xf32, #tpu.memory_space<vmem>>, vector<1x32x32xf32>
    %31 = vector.shape_cast %30 : vector<1x32x32xf32> to vector<32x32xf32>
    %cst_32 = arith.constant dense<0.000000e+00> : vector<32x128xf32>
    %32 = tpu.matmul %31, %27, %cst_32 {dimension_numbers = #tpu.dot_dimension_numbers<[1], [0], [0], [1], [0, 0, 1, 1], [], []>} : vector<32x32xf32>, vector<32x128xf32>, vector<32x128xf32> -> vector<32x128xf32>
    %c0_33 = arith.constant 0 : index
    %c0_34 = arith.constant 0 : index
    %c0_35 = arith.constant 0 : index
    %33 = vector.load %arg4[%c0_33, %c0_34, %c0_35] : memref<3x128x128xf32, #tpu.memory_space<vmem>>, vector<1x128x128xf32>
    %34 = vector.shape_cast %33 : vector<1x128x128xf32> to vector<128x128xf32>
    %cst_36 = arith.constant dense<0.000000e+00> : vector<32x128xf32>
    %35 = tpu.matmul %32, %34, %cst_36 {dimension_numbers = #tpu.dot_dimension_numbers<[1], [0], [0], [1], [0, 0, 1, 1], [], []>} : vector<32x128xf32>, vector<128x128xf32>, vector<32x128xf32> -> vector<32x128xf32>
    %36 = arith.addf %29, %35 : vector<32x128xf32>
    %c1_37 = arith.constant 1 : index
    %c0_38 = arith.constant 0 : index
    %c0_39 = arith.constant 0 : index
    %37 = vector.load %arg1[%c1_37, %c0_38, %c0_39] : memref<3x32x32xf32, #tpu.memory_space<vmem>>, vector<1x32x32xf32>
    %38 = vector.shape_cast %37 : vector<1x32x32xf32> to vector<32x32xf32>
    %cst_40 = arith.constant dense<0.000000e+00> : vector<32x128xf32>
    %39 = tpu.matmul %38, %27, %cst_40 {dimension_numbers = #tpu.dot_dimension_numbers<[1], [0], [0], [1], [0, 0, 1, 1], [], []>} : vector<32x32xf32>, vector<32x128xf32>, vector<32x128xf32> -> vector<32x128xf32>
    %c1_41 = arith.constant 1 : index
    %c0_42 = arith.constant 0 : index
    %c0_43 = arith.constant 0 : index
    %40 = vector.load %arg4[%c1_41, %c0_42, %c0_43] : memref<3x128x128xf32, #tpu.memory_space<vmem>>, vector<1x128x128xf32>
    %41 = vector.shape_cast %40 : vector<1x128x128xf32> to vector<128x128xf32>
    %cst_44 = arith.constant dense<0.000000e+00> : vector<32x128xf32>
    %42 = tpu.matmul %39, %41, %cst_44 {dimension_numbers = #tpu.dot_dimension_numbers<[1], [0], [0], [1], [0, 0, 1, 1], [], []>} : vector<32x128xf32>, vector<128x128xf32>, vector<32x128xf32> -> vector<32x128xf32>
    %43 = arith.addf %36, %42 : vector<32x128xf32>
    %c2_45 = arith.constant 2 : index
    %c0_46 = arith.constant 0 : index
    %c0_47 = arith.constant 0 : index
    %44 = vector.load %arg1[%c2_45, %c0_46, %c0_47] : memref<3x32x32xf32, #tpu.memory_space<vmem>>, vector<1x32x32xf32>
    %45 = vector.shape_cast %44 : vector<1x32x32xf32> to vector<32x32xf32>
    %cst_48 = arith.constant dense<0.000000e+00> : vector<32x128xf32>
    %46 = tpu.matmul %45, %27, %cst_48 {dimension_numbers = #tpu.dot_dimension_numbers<[1], [0], [0], [1], [0, 0, 1, 1], [], []>} : vector<32x32xf32>, vector<32x128xf32>, vector<32x128xf32> -> vector<32x128xf32>
    %c2_49 = arith.constant 2 : index
    %c0_50 = arith.constant 0 : index
    %c0_51 = arith.constant 0 : index
    %47 = vector.load %arg4[%c2_49, %c0_50, %c0_51] : memref<3x128x128xf32, #tpu.memory_space<vmem>>, vector<1x128x128xf32>
    %48 = vector.shape_cast %47 : vector<1x128x128xf32> to vector<128x128xf32>
    %cst_52 = arith.constant dense<0.000000e+00> : vector<32x128xf32>
    %49 = tpu.matmul %46, %48, %cst_52 {dimension_numbers = #tpu.dot_dimension_numbers<[1], [0], [0], [1], [0, 0, 1, 1], [], []>} : vector<32x128xf32>, vector<128x128xf32>, vector<32x128xf32> -> vector<32x128xf32>
    %50 = arith.addf %43, %49 : vector<32x128xf32>
    %c0_53 = arith.constant 0 : index
    %c0_54 = arith.constant 0 : index
    %51 = vector.load %arg6[%c0_53, %c0_54] : memref<1x128xf32, #tpu.memory_space<vmem>>, vector<1x128xf32>
    %52 = vector.broadcast %51 : vector<1x128xf32> to vector<32x128xf32>
    %53 = arith.addf %50, %52 : vector<32x128xf32>
    %cst_55 = arith.constant 0.000000e+00 : f32
    %54 = vector.broadcast %cst_55 : f32 to vector<32x128xf32>
    %55 = arith.maximumf %53, %54 : vector<32x128xf32>
    %c0_56 = arith.constant 0 : index
    %c0_57 = arith.constant 0 : index
    %56 = vector.load %arg7[%c0_56, %c0_57] : memref<32x128xf32, #tpu.memory_space<vmem>>, vector<32x128xf32>
    tpu.vector_store %arg7[%c0_56, %c0_57], %55 {strides = array<i32>} : memref<32x128xf32, #tpu.memory_space<vmem>>, vector<32x128xf32>,
    return
  }
}

</mosaic_0001>

<llo_original>
// kernel: tile.13
$region0: #{tile.13}
  #allocation0 [shape = 's32[1]{0}', space=sflag, size = 0x4, scoped, tag = 'scoped memory for tile.13']
  %s0 = inlined_call_operand.vmem [shape: f32[8], index: 0, kind: input, shape index: {}]
  %s1 = inlined_call_operand.vmem [shape: f32[16,8], index: 1, kind: output, shape index: {}]
  // Predicated region
  $region2: #{tile.13} parent=0 // pred_check
    _
  $region3: #{tile.13} parent=0 // pred_check_branch
    %3 = sbr.rel (0) target = $region5
  $region4: #{tile.13} parent=0 // pred_region
    _
  $region5: #{tile.13} parent=0 // pred_fallthru
    _
  %v4 = vld [vmem:[%s0] ss:$0 sm:$0xff]
  %5 = vst [vmem:[%s1] sm:$0xff] %v4
  %s6 = scalar_lea.vmem %s1, 8
  %7 = vst [vmem:[%s6] sm:$0xff] %v4

// kernel: tile.14
$region0: #{tile.14}
  %s0 = inlined_call_operand.vmem [shape: f32[16,8], index: 0, kind: input, shape index: {}]
  %s1 = inlined_call_operand.vmem [shape: f32[1,128], index: 1, kind: output, shape index: {}]
  $region1: #{tile.14} parent=0
    #allocation0 [shape = 'u8[4096]{0}', space=vmem, size = 0x1000, scoped, tag = 'scoped mem for output reshape']
    %v2 = vld [vmem:[%s0] sm:$0x1]
    %vm3 = vcmask 64512
    %4 = vst.msk [vmem:[#allocation0] sm:$0x1] %vm3, %v2
    %s5 = scalar_lea.vmem %s0, 15
    %v6 = vld [vmem:[%s5] sm:$0x1]
    %7 = vrot.lane.b32.xlu0 %v6, 120
    %v8 = vpop.permute.xlu0 %7
    %vm9 = vcmask 1048512
    %10 = vst.msk [vmem:[#allocation0] sm:$0x1] %vm9, %v8
    %s11 = scalar_lea.vmem %s0, 14
    %v12 = vld [vmem:[%s11] sm:$0x1]
    %13 = vrot.lane.b32.xlu0 %v12, 112
    %v14 = vpop.permute.xlu0 %13
    %vm15 = vcmask 982912
    %16 = vst.msk [vmem:[#allocation0] sm:$0x1] %vm15, %v14
    %s17 = scalar_lea.vmem %s0, 13
    %v18 = vld [vmem:[%s17] sm:$0x1]
    %19 = vrot.lane.b32.xlu0 %v18, 104
    %v20 = vpop.permute.xlu0 %19
    %vm21 = vcmask 917312
    %22 = vst.msk [vmem:[#allocation0] sm:$0x1] %vm21, %v20
    %s23 = scalar_lea.vmem %s0, 12
    %v24 = vld [vmem:[%s23] sm:$0x1]
    %25 = vrot.lane.b32.xlu0 %v24, 96
    %v26 = vpop.permute.xlu0 %25
    %vm27 = vcmask 851712
    %28 = vst.msk [vmem:[#allocation0] sm:$0x1] %vm27, %v26
    %s29 = scalar_lea.vmem %s0, 11
    %v30 = vld [vmem:[%s29] sm:$0x1]
    %31 = vrot.lane.b32.xlu0 %v30, 88
    %v32 = vpop.permute.xlu0 %31
    %vm33 = vcmask 786112
    %34 = vst.msk [vmem:[#allocation0] sm:$0x1] %vm33, %v32
    %s35 = scalar_lea.vmem %s0, 10
    %v36 = vld [vmem:[%s35] sm:$0x1]
    %37 = vrot.lane.b32.xlu0 %v36, 80
    %v38 = vpop.permute.xlu0 %37
    %vm39 = vcmask 720512
    %40 = vst.msk [vmem:[#allocation0] sm:$0x1] %vm39, %v38
    %s41 = scalar_lea.vmem %s0, 9
    %v42 = vld [vmem:[%s41] sm:$0x1]
    %43 = vrot.lane.b32.xlu0 %v42, 72
    %v44 = vpop.permute.xlu0 %43
    %vm45 = vcmask 654912
    %46 = vst.msk [vmem:[#allocation0] sm:$0x1] %vm45, %v44
    %s47 = scalar_lea.vmem %s0, 8
    %v48 = vld [vmem:[%s47] sm:$0x1]
    %49 = vrot.lane.b32.xlu0 %v48, 64
    %v50 = vpop.permute.xlu0 %49
    %vm51 = vcmask 589312
    %52 = vst.msk [vmem:[#allocation0] sm:$0x1] %vm51, %v50
    %s53 = scalar_lea.vmem %s0, 7
    %v54 = vld [vmem:[%s53] sm:$0x1]
    %55 = vrot.lane.b32.xlu0 %v54, 56
    %v56 = vpop.permute.xlu0 %55
    %vm57 = vcmask 523712
    %58 = vst.msk [vmem:[#allocation0] sm:$0x1] %vm57, %v56
    %s59 = scalar_lea.vmem %s0, 6
    %v60 = vld [vmem:[%s59] sm:$0x1]
    %61 = vrot.lane.b32.xlu0 %v60, 48
    %v62 = vpop.permute.xlu0 %61
    %vm63 = vcmask 458112
    %64 = vst.msk [vmem:[#allocation0] sm:$0x1] %vm63, %v62
    %s65 = scalar_lea.vmem %s0, 5
    %v66 = vld [vmem:[%s65] sm:$0x1]
    %67 = vrot.lane.b32.xlu0 %v66, 40
    %v68 = vpop.permute.xlu0 %67
    %vm69 = vcmask 392512
    %70 = vst.msk [vmem:[#allocation0] sm:$0x1] %vm69, %v68
    %s71 = scalar_lea.vmem %s0, 4
    %v72 = vld [vmem:[%s71] sm:$0x1]
    %73 = vrot.lane.b32.xlu0 %v72, 32
    %v74 = vpop.permute.xlu0 %73
    %vm75 = vcmask 326912
    %76 = vst.msk [vmem:[#allocation0] sm:$0x1] %vm75, %v74
    %s77 = scalar_lea.vmem %s0, 3
    %v78 = vld [vmem:[%s77] sm:$0x1]
    %79 = vrot.lane.b32.xlu0 %v78, 24
    %v80 = vpop.permute.xlu0 %79
    %vm81 = vcmask 261312
    %82 = vst.msk [vmem:[#allocation0] sm:$0x1] %vm81, %v80
    %s83 = scalar_lea.vmem %s0, 2
    %v84 = vld [vmem:[%s83] sm:$0x1]
    %85 = vrot.lane.b32.xlu0 %v84, 16
    %v86 = vpop.permute.xlu0 %85
    %vm87 = vcmask 195712
    %88 = vst.msk [vmem:[#allocation0] sm:$0x1] %vm87, %v86
    %s89 = scalar_lea.vmem %s0, 1
    %v90 = vld [vmem:[%s89] sm:$0x1]
    %91 = vrot.lane.b32.xlu0 %v90, 8
    %v92 = vpop.permute.xlu0 %91
    %vm93 = vcmask 130112
    %94 = vst.msk [vmem:[#allocation0] sm:$0x1] %vm93, %v92
    %s96 = ssub.s32 2, 1
    %v97 = vld [vmem:[#allocation0] sm:%s96]
    %s99 = ssub.s32 2, 1
    %100 = vst [vmem:[%s1] sm:%s99] %v97

// kernel: residual_block_forward.1
$region0: #{residual_block_forward.1}
  #allocation0 [shape = 'u32[]', space=smem, size = 0x4, offset = 0x4, fixed_abs, tag = 'smem constant byte address 0x4 - core index']
  #allocation1 [shape = 'u32[72,128]{1,0:T(1,128)}', space=vmem, size = 0x9000, scoped, tag = 'internal scratch']
  %s0 = inlined_call_operand.vmem [shape: f32[32,64], index: 0, kind: input, shape index: {}]
  %s1 = inlined_call_operand.vmem [shape: f32[3,32,32], index: 1, kind: input, shape index: {}]
  %s2 = inlined_call_operand.vmem [shape: f32[3,64,128], index: 2, kind: input, shape index: {}]
  %s3 = inlined_call_operand.vmem [shape: f32[1,128], index: 3, kind: input, shape index: {}]
  %s4 = inlined_call_operand.vmem [shape: f32[3,128,128], index: 4, kind: input, shape index: {}]
  %s5 = inlined_call_operand.vmem [shape: f32[64,128], index: 5, kind: input, shape index: {}]
  %s6 = inlined_call_operand.vmem [shape: f32[1,128], index: 6, kind: input, shape index: {}]
  %s7 = inlined_call_operand.vmem [shape: f32[32,128], index: 7, kind: output, shape index: {}]
  %s8 = sld [smem:[#allocation0]]
  $region38: #{residual_block_forward.1} parent=0
    _
  %s10 = ssub.s32 1, %s8
  %s11 = scalar_select 0, %s10, %s8
  // Predicated region
  $region2: #{residual_block_forward.1} parent=0 // pred_check
    _
  $region3: #{residual_block_forward.1} parent=0 // pred_check_branch
    %13 = sbr.rel (0) target = $region5
  $region4: #{residual_block_forward.1} parent=0 // pred_region
    _
  $region5: #{residual_block_forward.1} parent=0 // pred_fallthru
    _
  // Predicated region
  $region6: #{residual_block_forward.1} parent=0 // pred_check
    _
  $region7: #{residual_block_forward.1} parent=0 // pred_check_branch
    %15 = sbr.rel (0) target = $region9
  $region8: #{residual_block_forward.1} parent=0 // pred_region
    _
  $region9: #{residual_block_forward.1} parent=0 // pred_fallthru
    _
  // Predicated region
  $region10: #{residual_block_forward.1} parent=0 // pred_check
    _
  $region11: #{residual_block_forward.1} parent=0 // pred_check_branch
    %17 = sbr.rel (0) target = $region13
  $region12: #{residual_block_forward.1} parent=0 // pred_region
    _
  $region13: #{residual_block_forward.1} parent=0 // pred_fallthru
    _
  // Predicated region
  $region14: #{residual_block_forward.1} parent=0 // pred_check
    _
  $region15: #{residual_block_forward.1} parent=0 // pred_check_branch
    %19 = sbr.rel (0) target = $region17
  $region16: #{residual_block_forward.1} parent=0 // pred_region
    _
  $region17: #{residual_block_forward.1} parent=0 // pred_fallthru
    _
  // Predicated region
  $region18: #{residual_block_forward.1} parent=0 // pred_check
    _
  $region19: #{residual_block_forward.1} parent=0 // pred_check_branch
    %21 = sbr.rel (0) target = $region21
  $region20: #{residual_block_forward.1} parent=0 // pred_region
    _
  $region21: #{residual_block_forward.1} parent=0 // pred_fallthru
    _
  // Predicated region
  $region22: #{residual_block_forward.1} parent=0 // pred_check
    _
  $region23: #{residual_block_forward.1} parent=0 // pred_check_branch
    %23 = sbr.rel (0) target = $region25
  $region24: #{residual_block_forward.1} parent=0 // pred_region
    _
  $region25: #{residual_block_forward.1} parent=0 // pred_fallthru
    _
  // Predicated region
  $region26: #{residual_block_forward.1} parent=0 // pred_check
    _
  $region27: #{residual_block_forward.1} parent=0 // pred_check_branch
    %25 = sbr.rel (0) target = $region29
  $region28: #{residual_block_forward.1} parent=0 // pred_region
    _
  $region29: #{residual_block_forward.1} parent=0 // pred_fallthru
    _
  %v26 = vld [vmem:[%s0] sm:$0xff]
  %v27 = vld [vmem:[%s0 + $0x8] sm:$0xff]
  %v28 = vld [vmem:[%s0 + $0x10] sm:$0xff]
  %v29 = vld [vmem:[%s0 + $0x18] sm:$0xff]
  %v30 = vld [vmem:[%s1] sm:$0xff]
  %v31 = vld [vmem:[%s1 + $0x8] sm:$0xff]
  %v32 = vld [vmem:[%s1 + $0x10] sm:$0xff]
  %v33 = vld [vmem:[%s1 + $0x18] sm:$0xff]
  %vm34 = vcmask 261120
  %v36 = vsel %vm34, %v30, 0
  %v39 = vsel %vm34, %v31, 0
  %v42 = vsel %vm34, %v32, 0
  %v45 = vsel %vm34, %v33, 0
  %47 = vmatpush.msra.mxu0 0.0
  %48 = vmatpush.msra.mxu0 0.0
  %49 = vmatpush.msra.mxu0 0.0
  %50 = vmatpush.msra.mxu0 0.0
  %51 = vmatpush.msra.mxu0 0.0
  %52 = vmatpush.msra.mxu0 0.0
  %53 = vmatpush.msra.mxu0 0.0
  %54 = vmatpush.msra.mxu0 0.0
  %55 = vmatpush.msra.mxu0 0.0
  %56 = vmatpush.msra.mxu0 0.0
  %57 = vmatpush.msra.mxu0 0.0
  %58 = vmatpush.msra.mxu0 0.0
  %59 = vmatpush.msra.mxu0 %v29
  %60 = vmatpush.msra.mxu0 %v28
  %61 = vmatpush.msra.mxu0 %v27
  %62 = vmatpush.msra.mxu0 %v26
  %63 = vmatmul.f32.gmra.mxu0 %v36
  %v64 = vpop.f32.mrf.mxu0
  %v65 = vadd.f32 0.0, %v64
  %66 = vmatmul.f32.gmra.mxu0 %v39
  %v67 = vpop.f32.mrf.mxu0
  %v68 = vadd.f32 0.0, %v67
  %69 = vmatmul.f32.gmra.mxu0 %v42
  %v70 = vpop.f32.mrf.mxu0
  %v71 = vadd.f32 0.0, %v70
  %72 = vmatmul.f32.gmra.mxu0 %v45
  %v73 = vpop.f32.mrf.mxu0
  %v74 = vadd.f32 0.0, %v73
  %75 = vdwg.mxu0
  %v76 = vld [vmem:[%s2] sm:$0xff]
  %v77 = vld [vmem:[%s2 + $0x8] sm:$0xff]
  %v78 = vld [vmem:[%s2 + $0x10] sm:$0xff]
  %v79 = vld [vmem:[%s2 + $0x18] sm:$0xff]
  %v80 = vld [vmem:[%s2 + $0x20] sm:$0xff]
  %v81 = vld [vmem:[%s2 + $0x28] sm:$0xff]
  %v82 = vld [vmem:[%s2 + $0x30] sm:$0xff]
  %v83 = vld [vmem:[%s2 + $0x38] sm:$0xff]
  %s84 = scalar_lea.vmem %s1, 32
  %v85 = vld [vmem:[%s84] sm:$0xff]
  %v86 = vld [vmem:[%s84 + $0x8] sm:$0xff]
  %v87 = vld [vmem:[%s84 + $0x10] sm:$0xff]
  %v88 = vld [vmem:[%s84 + $0x18] sm:$0xff]
  %v90 = vsel %vm34, %v85, 0
  %v93 = vsel %vm34, %v86, 0
  %v96 = vsel %vm34, %v87, 0
  %v99 = vsel %vm34, %v88, 0
  %101 = vmatpush.msra.mxu0 0.0
  %102 = vmatpush.msra.mxu0 0.0
  %103 = vmatpush.msra.mxu0 0.0
  %104 = vmatpush.msra.mxu0 0.0
  %105 = vmatpush.msra.mxu0 0.0
  %106 = vmatpush.msra.mxu0 0.0
  %107 = vmatpush.msra.mxu0 0.0
  %108 = vmatpush.msra.mxu0 0.0
  %109 = vmatpush.msra.mxu0 0.0
  %110 = vmatpush.msra.mxu0 0.0
  %111 = vmatpush.msra.mxu0 0.0
  %112 = vmatpush.msra.mxu0 0.0
  %113 = vmatpush.msra.mxu0 %v29
  %114 = vmatpush.msra.mxu0 %v28
  %115 = vmatpush.msra.mxu0 %v27
  %116 = vmatpush.msra.mxu0 %v26
  %117 = vmatmul.f32.gmra.mxu0 %v90
  %v118 = vpop.f32.mrf.mxu0
  %v119 = vadd.f32 0.0, %v118
  %120 = vmatmul.f32.gmra.mxu0 %v93
  %v121 = vpop.f32.mrf.mxu0
  %v122 = vadd.f32 0.0, %v121
  %123 = vmatmul.f32.gmra.mxu0 %v96
  %v124 = vpop.f32.mrf.mxu0
  %v125 = vadd.f32 0.0, %v124
  %126 = vmatmul.f32.gmra.mxu0 %v99
  %v127 = vpop.f32.mrf.mxu0
  %v128 = vadd.f32 0.0, %v127
  %129 = vdwg.mxu0
  %s130 = scalar_lea.vmem %s2, 64
  %v131 = vld [vmem:[%s130] sm:$0xff]
  %v132 = vld [vmem:[%s130 + $0x8] sm:$0xff]
  %v133 = vld [vmem:[%s130 + $0x10] sm:$0xff]
  %v134 = vld [vmem:[%s130 + $0x18] sm:$0xff]
  %v135 = vld [vmem:[%s130 + $0x20] sm:$0xff]
  %v136 = vld [vmem:[%s130 + $0x28] sm:$0xff]
  %v137 = vld [vmem:[%s130 + $0x30] sm:$0xff]
  %v138 = vld [vmem:[%s130 + $0x38] sm:$0xff]
  %vm139 = vcmask 523264
  %v141 = vsel %vm139, %v119, 0
  %v144 = vsel %vm139, %v122, 0
  %v147 = vsel %vm139, %v125, 0
  %v150 = vsel %vm139, %v128, 0
  %152 = vmatpush.msra.mxu0 0.0
  %153 = vmatpush.msra.mxu0 0.0
  %154 = vmatpush.msra.mxu0 0.0
  %155 = vmatpush.msra.mxu0 0.0
  %156 = vmatpush.msra.mxu0 0.0
  %157 = vmatpush.msra.mxu0 0.0
  %158 = vmatpush.msra.mxu0 0.0
  %159 = vmatpush.msra.mxu0 0.0
  %160 = vmatpush.msra.mxu0 %v138
  %161 = vmatpush.msra.mxu0 %v137
  %162 = vmatpush.msra.mxu0 %v136
  %163 = vmatpush.msra.mxu0 %v135
  %164 = vmatpush.msra.mxu0 %v134
  %165 = vmatpush.msra.mxu0 %v133
  %166 = vmatpush.msra.mxu0 %v132
  %167 = vmatpush.msra.mxu0 %v131
  %168 = vmatmul.f32.gmra.mxu0 %v141
  %v169 = vpop.f32.mrf.mxu0
  %v170 = vadd.f32 0.0, %v169
  %171 = vmatmul.f32.gmra.mxu0 %v144
  %v172 = vpop.f32.mrf.mxu0
  %v173 = vadd.f32 0.0, %v172
  %174 = vmatmul.f32.gmra.mxu0 %v147
  %v175 = vpop.f32.mrf.mxu0
  %v176 = vadd.f32 0.0, %v175
  %177 = vmatmul.f32.gmra.mxu0 %v150
  %v178 = vpop.f32.mrf.mxu0
  %v179 = vadd.f32 0.0, %v178
  %180 = vdwg.mxu0
  %v182 = vsel %vm139, %v65, 0
  %v185 = vsel %vm139, %v68, 0
  %v188 = vsel %vm139, %v71, 0
  %v191 = vsel %vm139, %v74, 0
  %193 = vmatpush.msra.mxu0 0.0
  %194 = vmatpush.msra.mxu0 0.0
  %195 = vmatpush.msra.mxu0 0.0
  %196 = vmatpush.msra.mxu0 0.0
  %197 = vmatpush.msra.mxu0 0.0
  %198 = vmatpush.msra.mxu0 0.0
  %199 = vmatpush.msra.mxu0 0.0
  %200 = vmatpush.msra.mxu0 0.0
  %201 = vmatpush.msra.mxu0 %v83
  %202 = vmatpush.msra.mxu0 %v82
  %203 = vmatpush.msra.mxu0 %v81
  %204 = vmatpush.msra.mxu0 %v80
  %205 = vmatpush.msra.mxu0 %v79
  %206 = vmatpush.msra.mxu0 %v78
  %207 = vmatpush.msra.mxu0 %v77
  %208 = vmatpush.msra.mxu0 %v76
  %209 = vmatmul.f32.gmra.mxu0 %v182
  %v210 = vpop.f32.mrf.mxu0
  %v211 = vadd.f32 %v170, %v210
  %212 = vmatmul.f32.gmra.mxu0 %v185
  %v213 = vpop.f32.mrf.mxu0
  %v214 = vadd.f32 %v173, %v213
  %215 = vmatmul.f32.gmra.mxu0 %v188
  %v216 = vpop.f32.mrf.mxu0
  %v217 = vadd.f32 %v176, %v216
  %218 = vmatmul.f32.gmra.mxu0 %v191
  %v219 = vpop.f32.mrf.mxu0
  %v220 = vadd.f32 %v179, %v219
  %221 = vdwg.mxu0
  %s222 = scalar_lea.vmem %s1, 64
  %v223 = vld [vmem:[%s222] sm:$0xff]
  %v224 = vld [vmem:[%s222 + $0x8] sm:$0xff]
  %v225 = vld [vmem:[%s222 + $0x10] sm:$0xff]
  %v226 = vld [vmem:[%s222 + $0x18] sm:$0xff]
  %v228 = vsel %vm34, %v223, 0
  %v231 = vsel %vm34, %v224, 0
  %v234 = vsel %vm34, %v225, 0
  %v237 = vsel %vm34, %v226, 0
  %239 = vmatpush.msra.mxu0 0.0
  %240 = vmatpush.msra.mxu0 0.0
  %241 = vmatpush.msra.mxu0 0.0
  %242 = vmatpush.msra.mxu0 0.0
  %243 = vmatpush.msra.mxu0 0.0
  %244 = vmatpush.msra.mxu0 0.0
  %245 = vmatpush.msra.mxu0 0.0
  %246 = vmatpush.msra.mxu0 0.0
  %247 = vmatpush.msra.mxu0 0.0
  %248 = vmatpush.msra.mxu0 0.0
  %249 = vmatpush.msra.mxu0 0.0
  %250 = vmatpush.msra.mxu0 0.0
  %251 = vmatpush.msra.mxu0 %v29
  %252 = vmatpush.msra.mxu0 %v28
  %253 = vmatpush.msra.mxu0 %v27
  %254 = vmatpush.msra.mxu0 %v26
  %255 = vmatmul.f32.gmra.mxu0 %v228
  %v256 = vpop.f32.mrf.mxu0
  %v257 = vadd.f32 0.0, %v256
  %258 = vmatmul.f32.gmra.mxu0 %v231
  %v259 = vpop.f32.mrf.mxu0
  %v260 = vadd.f32 0.0, %v259
  %261 = vmatmul.f32.gmra.mxu0 %v234
  %v262 = vpop.f32.mrf.mxu0
  %v263 = vadd.f32 0.0, %v262
  %264 = vmatmul.f32.gmra.mxu0 %v237
  %v265 = vpop.f32.mrf.mxu0
  %v266 = vadd.f32 0.0, %v265
  %267 = vdwg.mxu0
  %s268 = scalar_lea.vmem %s2, 128
  %v269 = vld [vmem:[%s268] sm:$0xff]
  %v270 = vld [vmem:[%s268 + $0x8] sm:$0xff]
  %v271 = vld [vmem:[%s268 + $0x10] sm:$0xff]
  %v272 = vld [vmem:[%s268 + $0x18] sm:$0xff]
  %v273 = vld [vmem:[%s268 + $0x20] sm:$0xff]
  %v274 = vld [vmem:[%s268 + $0x28] sm:$0xff]
  %v275 = vld [vmem:[%s268 + $0x30] sm:$0xff]
  %v276 = vld [vmem:[%s268 + $0x38] sm:$0xff]
  %v278 = vsel %vm139, %v257, 0
  %v281 = vsel %vm139, %v260, 0
  %v284 = vsel %vm139, %v263, 0
  %v287 = vsel %vm139, %v266, 0
  %289 = vmatpush.msra.mxu0 0.0
  %290 = vmatpush.msra.mxu0 0.0
  %291 = vmatpush.msra.mxu0 0.0
  %292 = vmatpush.msra.mxu0 0.0
  %293 = vmatpush.msra.mxu0 0.0
  %294 = vmatpush.msra.mxu0 0.0
  %295 = vmatpush.msra.mxu0 0.0
  %296 = vmatpush.msra.mxu0 0.0
  %297 = vmatpush.msra.mxu0 %v276
  %298 = vmatpush.msra.mxu0 %v275
  %299 = vmatpush.msra.mxu0 %v274
  %300 = vmatpush.msra.mxu0 %v273
  %301 = vmatpush.msra.mxu0 %v272
  %302 = vmatpush.msra.mxu0 %v271
  %303 = vmatpush.msra.mxu0 %v270
  %304 = vmatpush.msra.mxu0 %v269
  %305 = vmatmul.f32.gmra.mxu0 %v278
  %v306 = vpop.f32.mrf.mxu0
  %v307 = vadd.f32 0.0, %v306
  %308 = vmatmul.f32.gmra.mxu0 %v281
  %v309 = vpop.f32.mrf.mxu0
  %v310 = vadd.f32 0.0, %v309
  %311 = vmatmul.f32.gmra.mxu0 %v284
  %v312 = vpop.f32.mrf.mxu0
  %v313 = vadd.f32 0.0, %v312
  %314 = vmatmul.f32.gmra.mxu0 %v287
  %v315 = vpop.f32.mrf.mxu0
  %v316 = vadd.f32 0.0, %v315
  %317 = vdwg.mxu0
  %v318 = vadd.f32 %v211, %v307
  %v319 = vadd.f32 %v214, %v310
  %v320 = vadd.f32 %v217, %v313
  %v321 = vadd.f32 %v220, %v316
  %v322 = vld [vmem:[%s3] sm:$0x1]
  %v324 = vperm.slane %v322, 0
  %v326 = vadd.f32 %v318, %v324
  %v327 = vadd.f32 %v319, %v324
  %v328 = vadd.f32 %v320, %v324
  %v329 = vadd.f32 %v321, %v324
  %v330 = vmax.f32 %v326, 0.0
  %v331 = vmax.f32 %v327, 0.0
  %v332 = vmax.f32 %v328, 0.0
  %v333 = vmax.f32 %v329, 0.0
  %v334 = vld [vmem:[%s5] sm:$0xff]
  %v335 = vld [vmem:[%s5 + $0x8] sm:$0xff]
  %v336 = vld [vmem:[%s5 + $0x10] sm:$0xff]
  %v337 = vld [vmem:[%s5 + $0x18] sm:$0xff]
  %v338 = vld [vmem:[%s5 + $0x20] sm:$0xff]
  %v339 = vld [vmem:[%s5 + $0x28] sm:$0xff]
  %v340 = vld [vmem:[%s5 + $0x30] sm:$0xff]
  %v341 = vld [vmem:[%s5 + $0x38] sm:$0xff]
  %342 = vmatpush.msra.mxu0 0.0
  %343 = vmatpush.msra.mxu0 0.0
  %344 = vmatpush.msra.mxu0 0.0
  %345 = vmatpush.msra.mxu0 0.0
  %346 = vmatpush.msra.mxu0 0.0
  %347 = vmatpush.msra.mxu0 0.0
  %348 = vmatpush.msra.mxu0 0.0
  %349 = vmatpush.msra.mxu0 0.0
  %350 = vmatpush.msra.mxu0 0.0
  %351 = vmatpush.msra.mxu0 0.0
  %352 = vmatpush.msra.mxu0 0.0
  %353 = vmatpush.msra.mxu0 0.0
  %354 = vmatpush.msra.mxu0 %v333
  %355 = vmatpush.msra.mxu0 %v332
  %356 = vmatpush.msra.mxu0 %v331
  %357 = vmatpush.msra.mxu0 %v330
  %358 = vmatmul.f32.gmra.mxu0 %v36
  %v359 = vpop.f32.mrf.mxu0
  %v360 = vadd.f32 0.0, %v359
  %361 = vmatmul.f32.gmra.mxu0 %v39
  %v362 = vpop.f32.mrf.mxu0
  %v363 = vadd.f32 0.0, %v362
  %364 = vmatmul.f32.gmra.mxu0 %v42
  %v365 = vpop.f32.mrf.mxu0
  %v366 = vadd.f32 0.0, %v365
  %367 = vmatmul.f32.gmra.mxu0 %v45
  %v368 = vpop.f32.mrf.mxu0
  %v369 = vadd.f32 0.0, %v368
  %370 = vdwg.mxu0
  %v371 = vld [vmem:[%s4] sm:$0xff]
  %v372 = vld [vmem:[%s4 + $0x8] sm:$0xff]
  %v373 = vld [vmem:[%s4 + $0x10] sm:$0xff]
  %v374 = vld [vmem:[%s4 + $0x18] sm:$0xff]
  %v375 = vld [vmem:[%s4 + $0x20] sm:$0xff]
  %v376 = vld [vmem:[%s4 + $0x28] sm:$0xff]
  %v377 = vld [vmem:[%s4 + $0x30] sm:$0xff]
  %v378 = vld [vmem:[%s4 + $0x38] sm:$0xff]
  %v379 = vld [vmem:[%s4 + $0x40] sm:$0xff]
  %v380 = vld [vmem:[%s4 + $0x48] sm:$0xff]
  %v381 = vld [vmem:[%s4 + $0x50] sm:$0xff]
  %v382 = vld [vmem:[%s4 + $0x58] sm:$0xff]
  %v383 = vld [vmem:[%s4 + $0x60] sm:$0xff]
  %v384 = vld [vmem:[%s4 + $0x68] sm:$0xff]
  %v385 = vld [vmem:[%s4 + $0x70] sm:$0xff]
  %v386 = vld [vmem:[%s4 + $0x78] sm:$0xff]
  %387 = vmatpush.msra.mxu0 %v386
  %388 = vmatpush.msra.mxu0 %v385
  %389 = vmatpush.msra.mxu0 %v384
  %390 = vmatpush.msra.mxu0 %v383
  %391 = vmatpush.msra.mxu0 %v382
  %392 = vmatpush.msra.mxu0 %v381
  %393 = vmatpush.msra.mxu0 %v380
  %394 = vmatpush.msra.mxu0 %v379
  %395 = vmatpush.msra.mxu0 %v378
  %396 = vmatpush.msra.mxu0 %v377
  %397 = vmatpush.msra.mxu0 %v376
  %398 = vmatpush.msra.mxu0 %v375
  %399 = vmatpush.msra.mxu0 %v374
  %400 = vmatpush.msra.mxu0 %v373
  %401 = vmatpush.msra.mxu0 %v372
  %402 = vmatpush.msra.mxu0 %v371
  %403 = vmatmul.f32.gmra.mxu0 %v360
  %v404 = vpop.f32.mrf.mxu0
  %v405 = vadd.f32 0.0, %v404
  %406 = vmatmul.f32.gmra.mxu0 %v363
  %v407 = vpop.f32.mrf.mxu0
  %v408 = vadd.f32 0.0, %v407
  %409 = vmatmul.f32.gmra.mxu0 %v366
  %v410 = vpop.f32.mrf.mxu0
  %v411 = vadd.f32 0.0, %v410
  %412 = vmatmul.f32.gmra.mxu0 %v369
  %v413 = vpop.f32.mrf.mxu0
  %v414 = vadd.f32 0.0, %v413
  %415 = vdwg.mxu0
  %v417 = vsel %vm139, %v26, 0
  %v420 = vsel %vm139, %v27, 0
  %v423 = vsel %vm139, %v28, 0
  %v426 = vsel %vm139, %v29, 0
  %428 = vmatpush.msra.mxu0 0.0
  %429 = vmatpush.msra.mxu0 0.0
  %430 = vmatpush.msra.mxu0 0.0
  %431 = vmatpush.msra.mxu0 0.0
  %432 = vmatpush.msra.mxu0 0.0
  %433 = vmatpush.msra.mxu0 0.0
  %434 = vmatpush.msra.mxu0 0.0
  %435 = vmatpush.msra.mxu0 0.0
  %436 = vmatpush.msra.mxu0 %v341
  %437 = vmatpush.msra.mxu0 %v340
  %438 = vmatpush.msra.mxu0 %v339
  %439 = vmatpush.msra.mxu0 %v338
  %440 = vmatpush.msra.mxu0 %v337
  %441 = vmatpush.msra.mxu0 %v336
  %442 = vmatpush.msra.mxu0 %v335
  %443 = vmatpush.msra.mxu0 %v334
  %444 = vmatmul.f32.gmra.mxu0 %v417
  %v445 = vpop.f32.mrf.mxu0
  %v446 = vadd.f32 %v405, %v445
  %447 = vmatmul.f32.gmra.mxu0 %v420
  %v448 = vpop.f32.mrf.mxu0
  %v449 = vadd.f32 %v408, %v448
  %450 = vmatmul.f32.gmra.mxu0 %v423
  %v451 = vpop.f32.mrf.mxu0
  %v452 = vadd.f32 %v411, %v451
  %453 = vmatmul.f32.gmra.mxu0 %v426
  %v454 = vpop.f32.mrf.mxu0
  %v455 = vadd.f32 %v414, %v454
  %456 = vdwg.mxu0
  %457 = vmatpush.msra.mxu0 0.0
  %458 = vmatpush.msra.mxu0 0.0
  %459 = vmatpush.msra.mxu0 0.0
  %460 = vmatpush.msra.mxu0 0.0
  %461 = vmatpush.msra.mxu0 0.0
  %462 = vmatpush.msra.mxu0 0.0
  %463 = vmatpush.msra.mxu0 0.0
  %464 = vmatpush.msra.mxu0 0.0
  %465 = vmatpush.msra.mxu0 0.0
  %466 = vmatpush.msra.mxu0 0.0
  %467 = vmatpush.msra.mxu0 0.0
  %468 = vmatpush.msra.mxu0 0.0
  %469 = vmatpush.msra.mxu0 %v333
  %470 = vmatpush.msra.mxu0 %v332
  %471 = vmatpush.msra.mxu0 %v331
  %472 = vmatpush.msra.mxu0 %v330
  %473 = vmatmul.f32.gmra.mxu0 %v90
  %v474 = vpop.f32.mrf.mxu0
  %v475 = vadd.f32 0.0, %v474
  %476 = vmatmul.f32.gmra.mxu0 %v93
  %v477 = vpop.f32.mrf.mxu0
  %v478 = vadd.f32 0.0, %v477
  %479 = vmatmul.f32.gmra.mxu0 %v96
  %v480 = vpop.f32.mrf.mxu0
  %v481 = vadd.f32 0.0, %v480
  %482 = vmatmul.f32.gmra.mxu0 %v99
  %v483 = vpop.f32.mrf.mxu0
  %v484 = vadd.f32 0.0, %v483
  %485 = vdwg.mxu0
  %s486 = scalar_lea.vmem %s4, 128
  %v487 = vld [vmem:[%s486] sm:$0xff]
  %v488 = vld [vmem:[%s486 + $0x8] sm:$0xff]
  %v489 = vld [vmem:[%s486 + $0x10] sm:$0xff]
  %v490 = vld [vmem:[%s486 + $0x18] sm:$0xff]
  %v491 = vld [vmem:[%s486 + $0x20] sm:$0xff]
  %v492 = vld [vmem:[%s486 + $0x28] sm:$0xff]
  %v493 = vld [vmem:[%s486 + $0x30] sm:$0xff]
  %v494 = vld [vmem:[%s486 + $0x38] sm:$0xff]
  %v495 = vld [vmem:[%s486 + $0x40] sm:$0xff]
  %v496 = vld [vmem:[%s486 + $0x48] sm:$0xff]
  %v497 = vld [vmem:[%s486 + $0x50] sm:$0xff]
  %v498 = vld [vmem:[%s486 + $0x58] sm:$0xff]
  %v499 = vld [vmem:[%s486 + $0x60] sm:$0xff]
  %v500 = vld [vmem:[%s486 + $0x68] sm:$0xff]
  %v501 = vld [vmem:[%s486 + $0x70] sm:$0xff]
  %v502 = vld [vmem:[%s486 + $0x78] sm:$0xff]
  %503 = vmatpush.msra.mxu0 %v502
  %504 = vmatpush.msra.mxu0 %v501
  %505 = vmatpush.msra.mxu0 %v500
  %506 = vmatpush.msra.mxu0 %v499
  %507 = vmatpush.msra.mxu0 %v498
  %508 = vmatpush.msra.mxu0 %v497
  %509 = vmatpush.msra.mxu0 %v496
  %510 = vmatpush.msra.mxu0 %v495
  %511 = vmatpush.msra.mxu0 %v494
  %512 = vmatpush.msra.mxu0 %v493
  %513 = vmatpush.msra.mxu0 %v492
  %514 = vmatpush.msra.mxu0 %v491
  %515 = vmatpush.msra.mxu0 %v490
  %516 = vmatpush.msra.mxu0 %v489
  %517 = vmatpush.msra.mxu0 %v488
  %518 = vmatpush.msra.mxu0 %v487
  %519 = vmatmul.f32.gmra.mxu0 %v475
  %v520 = vpop.f32.mrf.mxu0
  %v521 = vadd.f32 0.0, %v520
  %522 = vmatmul.f32.gmra.mxu0 %v478
  %v523 = vpop.f32.mrf.mxu0
  %v524 = vadd.f32 0.0, %v523
  %525 = vmatmul.f32.gmra.mxu0 %v481
  %v526 = vpop.f32.mrf.mxu0
  %v527 = vadd.f32 0.0, %v526
  %528 = vmatmul.f32.gmra.mxu0 %v484
  %v529 = vpop.f32.mrf.mxu0
  %v530 = vadd.f32 0.0, %v529
  %531 = vdwg.mxu0
  %v532 = vadd.f32 %v446, %v521
  %v533 = vadd.f32 %v449, %v524
  %v534 = vadd.f32 %v452, %v527
  %v535 = vadd.f32 %v455, %v530
  %536 = vmatpush.msra.mxu0 0.0
  %537 = vmatpush.msra.mxu0 0.0
  %538 = vmatpush.msra.mxu0 0.0
  %539 = vmatpush.msra.mxu0 0.0
  %540 = vmatpush.msra.mxu0 0.0
  %541 = vmatpush.msra.mxu0 0.0
  %542 = vmatpush.msra.mxu0 0.0
  %543 = vmatpush.msra.mxu0 0.0
  %544 = vmatpush.msra.mxu0 0.0
  %545 = vmatpush.msra.mxu0 0.0
  %546 = vmatpush.msra.mxu0 0.0
  %547 = vmatpush.msra.mxu0 0.0
  %548 = vmatpush.msra.mxu0 %v333
  %549 = vmatpush.msra.mxu0 %v332
  %550 = vmatpush.msra.mxu0 %v331
  %551 = vmatpush.msra.mxu0 %v330
  %552 = vmatmul.f32.gmra.mxu0 %v228
  %v553 = vpop.f32.mrf.mxu0
  %v554 = vadd.f32 0.0, %v553
  %555 = vmatmul.f32.gmra.mxu0 %v231
  %v556 = vpop.f32.mrf.mxu0
  %v557 = vadd.f32 0.0, %v556
  %558 = vmatmul.f32.gmra.mxu0 %v234
  %v559 = vpop.f32.mrf.mxu0
  %v560 = vadd.f32 0.0, %v559
  %561 = vmatmul.f32.gmra.mxu0 %v237
  %v562 = vpop.f32.mrf.mxu0
  %v563 = vadd.f32 0.0, %v562
  %564 = vdwg.mxu0
  %s565 = scalar_lea.vmem %s4, 256
  %v566 = vld [vmem:[%s565] sm:$0xff]
  %v567 = vld [vmem:[%s565 + $0x8] sm:$0xff]
  %v568 = vld [vmem:[%s565 + $0x10] sm:$0xff]
  %v569 = vld [vmem:[%s565 + $0x18] sm:$0xff]
  %v570 = vld [vmem:[%s565 + $0x20] sm:$0xff]
  %v571 = vld [vmem:[%s565 + $0x28] sm:$0xff]
  %v572 = vld [vmem:[%s565 + $0x30] sm:$0xff]
  %v573 = vld [vmem:[%s565 + $0x38] sm:$0xff]
  %v574 = vld [vmem:[%s565 + $0x40] sm:$0xff]
  %v575 = vld [vmem:[%s565 + $0x48] sm:$0xff]
  %v576 = vld [vmem:[%s565 + $0x50] sm:$0xff]
  %v577 = vld [vmem:[%s565 + $0x58] sm:$0xff]
  %v578 = vld [vmem:[%s565 + $0x60] sm:$0xff]
  %v579 = vld [vmem:[%s565 + $0x68] sm:$0xff]
  %v580 = vld [vmem:[%s565 + $0x70] sm:$0xff]
  %v581 = vld [vmem:[%s565 + $0x78] sm:$0xff]
  %582 = vmatpush.msra.mxu0 %v581
  %583 = vmatpush.msra.mxu0 %v580
  %584 = vmatpush.msra.mxu0 %v579
  %585 = vmatpush.msra.mxu0 %v578
  %586 = vmatpush.msra.mxu0 %v577
  %587 = vmatpush.msra.mxu0 %v576
  %588 = vmatpush.msra.mxu0 %v575
  %589 = vmatpush.msra.mxu0 %v574
  %590 = vmatpush.msra.mxu0 %v573
  %591 = vmatpush.msra.mxu0 %v572
  %592 = vmatpush.msra.mxu0 %v571
  %593 = vmatpush.msra.mxu0 %v570
  %594 = vmatpush.msra.mxu0 %v569
  %595 = vmatpush.msra.mxu0 %v568
  %596 = vmatpush.msra.mxu0 %v567
  %597 = vmatpush.msra.mxu0 %v566
  %598 = vmatmul.f32.gmra.mxu0 %v554
  %v599 = vpop.f32.mrf.mxu0
  %v600 = vadd.f32 0.0, %v599
  %601 = vmatmul.f32.gmra.mxu0 %v557
  %v602 = vpop.f32.mrf.mxu0
  %v603 = vadd.f32 0.0, %v602
  %604 = vmatmul.f32.gmra.mxu0 %v560
  %v605 = vpop.f32.mrf.mxu0
  %v606 = vadd.f32 0.0, %v605
  %607 = vmatmul.f32.gmra.mxu0 %v563
  %v608 = vpop.f32.mrf.mxu0
  %v609 = vadd.f32 0.0, %v608
  %610 = vdwg.mxu0
  %v611 = vadd.f32 %v532, %v600
  %v612 = vadd.f32 %v533, %v603
  %v613 = vadd.f32 %v534, %v606
  %v614 = vadd.f32 %v535, %v609
  %v615 = vld [vmem:[%s6] sm:$0x1]
  %v617 = vperm.slane %v615, 0
  %v619 = vadd.f32 %v611, %v617
  %v620 = vadd.f32 %v612, %v617
  %v621 = vadd.f32 %v613, %v617
  %v622 = vadd.f32 %v614, %v617
  %v623 = vmax.f32 %v619, 0.0
  %v624 = vmax.f32 %v620, 0.0
  %v625 = vmax.f32 %v621, 0.0
  %v626 = vmax.f32 %v622, 0.0
  %627 = vst [vmem:[%s7] sm:$0xff] %v623
  %628 = vst [vmem:[%s7 + $0x8] sm:$0xff] %v624
  %629 = vst [vmem:[%s7 + $0x10] sm:$0xff] %v625
  %630 = vst [vmem:[%s7 + $0x18] sm:$0xff] %v626
  // Predicated region
  $region30: #{residual_block_forward.1} parent=0 // pred_check
    _
  $region31: #{residual_block_forward.1} parent=0 // pred_check_branch
    %632 = sbr.rel (0) target = $region33
  $region32: #{residual_block_forward.1} parent=0 // pred_region
    _
  $region33: #{residual_block_forward.1} parent=0 // pred_fallthru
    _
  // Predicated region
  $region34: #{residual_block_forward.1} parent=0 // pred_check
    _
  $region35: #{residual_block_forward.1} parent=0 // pred_check_branch
    %634 = sbr.rel (0) target = $region37
  $region36: #{residual_block_forward.1} parent=0 // pred_region
    _
  $region37: #{residual_block_forward.1} parent=0 // pred_fallthru
    _

</llo_original>
